<compile_context>
chip_gen: v5e
topology: v5e:2x2
jax: 0.10.0
libtpu: 0.0.40
codegen_flags: <defaults>
</compile_context>

<pallas_src>
import jax
import jax.numpy as jnp
from jax.experimental import pallas as pl
from jax.experimental.pallas import tpu as pltpu


def _nonlinear_enhance_kernel(x_ref, o_ref):
    x = x_ref[...]                        # (tb, F)
    x2 = x * x
    x3 = x2 * x
    x4 = x2 * x2
    F = x.shape[1]
    # Static lane-slice stores into the (tb, 4F) output tile (no concat needed).
    o_ref[:, 0 * F:1 * F] = x.astype(o_ref.dtype)
    o_ref[:, 1 * F:2 * F] = x2.astype(o_ref.dtype)
    o_ref[:, 2 * F:3 * F] = x3.astype(o_ref.dtype)
    o_ref[:, 3 * F:4 * F] = x4.astype(o_ref.dtype)


def _round_up(n: int, m: int) -> int:
    return ((n + m - 1) // m) * m


def _pick_batch_tile(B: int, F: int, itemsize: int, *, tb_max: int = 2048,
                     vmem_budget_bytes: int = 16 * 1024 * 1024) -> int:
    """Largest batch tile (multiple of 8) that (a) fits the VMEM budget for the
    double-buffered input (tb,F) + output (tb,4F) blocks and (b) still leaves
    >= 2 grid steps for megacore sharding when the batch allows it."""
    # Double-buffered in+out bytes per step: 2 * tb * (F + 4F) * itemsize
    vmem_cap = vmem_budget_bytes // (2 * 5 * F * itemsize)
    vmem_cap = max(8, (vmem_cap // 8) * 8)
    tb = min(tb_max, vmem_cap, _round_up(pl.cdiv(B, 2), 8))
    return max(tb, 8)


def nonlinear_enhance(x):
    """Pallas implementation of NonlinearEnhance.forward.

    x: (B, F)  ->  (B, 4F) = concat([x, x**2, x**3, x**4], axis=1)
    """
    B, F = x.shape
    itemsize = jnp.dtype(x.dtype).itemsize

    tb = _pick_batch_tile(B, F, itemsize)

    Bp = _round_up(B, tb)
    if Bp != B:
        x = jnp.pad(x, ((0, Bp - B), (0, 0)))   # zero rows: powers are zero too

    grid = (Bp // tb,)

    out = pl.pallas_call(
        _nonlinear_enhance_kernel,
        out_shape=jax.ShapeDtypeStruct((Bp, 4 * F), x.dtype),
        grid_spec=pltpu.PrefetchScalarGridSpec(
            num_scalar_prefetch=0,
            grid=grid,
            in_specs=[pl.BlockSpec((tb, F), lambda i: (i, 0))],
            out_specs=pl.BlockSpec((tb, 4 * F), lambda i: (i, 0)),
        ),
        compiler_params=pltpu.CompilerParams(
            dimension_semantics=("parallel",)),
    )(x)

    if Bp != B:
        out = out[:B]
    return out


def _reference(x):
    return jnp.concatenate([x, x ** 2, x ** 3, x ** 4], axis=1)


if __name__ == "__main__":
    # Small shapes consistent with the module: in_features=32 -> out_features=128.
    B, F = 128, 32

    key = jax.random.PRNGKey(0)
    k0, k1 = jax.random.split(key, 2)

    x = jax.random.normal(k0, (B, F), jnp.float32)
    out = nonlinear_enhance(x)
    jax.block_until_ready(out)
    assert out.shape == (B, 4 * F)
    assert jnp.allclose(out, _reference(x), atol=1e-6, rtol=1e-6)

    # Ragged batch (not a multiple of 8 / of the tile) exercises cdiv + padding.
    x_ragged = jax.random.normal(k1, (52, F), jnp.float32)
    out_ragged = nonlinear_enhance(x_ragged)
    jax.block_until_ready(out_ragged)
    assert out_ragged.shape == (52, 4 * F)
    assert jnp.allclose(out_ragged, _reference(x_ragged), atol=1e-6, rtol=1e-6)

    print("KERNEL_OK")
</pallas_src>

<mosaic_0001>
module attributes {stable_mosaic.version = 11 : i64} {
  func.func @_nonlinear_enhance_kernel(%arg0: i32, %arg1: memref<64x32xf32, #tpu.memory_space<vmem>>, %arg2: memref<64x128xf32, #tpu.memory_space<vmem>>) attributes {dimension_semantics = [#tpu.dimension_semantics<parallel>], iteration_bounds = array<i64: 2>, scalar_prefetch = 0 : i64, scratch_operands = 0 : i64, tpu.core_type = #tpu.core_type<tc>, window_params = [{transform_indices = @transform_0, window_bounds = array<i64: 64, 32>}, {transform_indices = @transform_1, window_bounds = array<i64: 64, 128>}]} {
    %c0 = arith.constant 0 : index
    %c0_0 = arith.constant 0 : index
    %0 = vector.load %arg1[%c0, %c0_0] : memref<64x32xf32, #tpu.memory_space<vmem>>, vector<64x32xf32>
    %1 = arith.mulf %0, %0 : vector<64x32xf32>
    %2 = arith.mulf %1, %0 : vector<64x32xf32>
    %3 = arith.mulf %1, %1 : vector<64x32xf32>
    %c0_1 = arith.constant 0 : index
    %c0_2 = arith.constant 0 : index
    %4 = vector.load %arg2[%c0_1, %c0_2] : memref<64x128xf32, #tpu.memory_space<vmem>>, vector<64x32xf32>
    tpu.vector_store %arg2[%c0_1, %c0_2], %0 {strides = array<i32>} : memref<64x128xf32, #tpu.memory_space<vmem>>, vector<64x32xf32>,
    %c0_3 = arith.constant 0 : index
    %c32 = arith.constant 32 : index
    %5 = vector.load %arg2[%c0_3, %c32] : memref<64x128xf32, #tpu.memory_space<vmem>>, vector<64x32xf32>
    tpu.vector_store %arg2[%c0_3, %c32], %1 {strides = array<i32>} : memref<64x128xf32, #tpu.memory_space<vmem>>, vector<64x32xf32>,
    %c0_4 = arith.constant 0 : index
    %c64 = arith.constant 64 : index
    %6 = vector.load %arg2[%c0_4, %c64] : memref<64x128xf32, #tpu.memory_space<vmem>>, vector<64x32xf32>
    tpu.vector_store %arg2[%c0_4, %c64], %2 {strides = array<i32>} : memref<64x128xf32, #tpu.memory_space<vmem>>, vector<64x32xf32>,
    %c0_5 = arith.constant 0 : index
    %c96 = arith.constant 96 : index
    %7 = vector.load %arg2[%c0_5, %c96] : memref<64x128xf32, #tpu.memory_space<vmem>>, vector<64x32xf32>
    tpu.vector_store %arg2[%c0_5, %c96], %3 {strides = array<i32>} : memref<64x128xf32, #tpu.memory_space<vmem>>, vector<64x32xf32>,
    return
  }
  func.func @transform_0(%arg0: i32) -> (i32, i32) {
    %c0_i32 = arith.constant 0 : i32
    %c0_i32_0 = arith.constant 0 : i32
    return %arg0, %c0_i32 : i32, i32
  }
  func.func @transform_1(%arg0: i32) -> (i32, i32) {
    %c0_i32 = arith.constant 0 : i32
    %c0_i32_0 = arith.constant 0 : i32
    return %arg0, %c0_i32 : i32, i32
  }
}

</mosaic_0001>

<llo_original>
// kernel: tpu_custom_call.1
$region0: #{tpu_custom_call.1}
  #allocation0 [shape = 'u32[]', space=smem, size = 0x4, offset = 0x4, fixed_abs, tag = 'smem constant byte address 0x4 - core index']
  #allocation1 [shape = 'u32[72,128]{1,0:T(1,128)}', space=vmem, size = 0x9000, scoped, tag = 'internal scratch']
  %s0 = inlined_call_operand.vmem [shape: f32[128,32], index: 0, kind: input, shape index: {}]
  %s1 = inlined_call_operand.hbm [shape: f32[128,128], index: 1, kind: output, shape index: {}]
  %s2 = sld [smem:[#allocation0]]
  $region37: #{tpu_custom_call.1} parent=0
    _
  %s4 = ssub.s32 1, %s2
  %s5 = scalar_select 0, %s4, %s2
  $region1: #{tpu_custom_call.1} parent=0
    #allocation2 [shape = 'u8[65536]{0}', space=vmem, size = 0x10000, scoped, tag = 'output window, operand 0']
    #allocation3 [shape = 's32[2]{0}', space=sflag, size = 0x8, scoped, tag = 'scoped memory for tpu_custom_call.1']
    %6 = vsyncpa [#allocation3], 0
    %s7 = scalar_lea.sflag [#allocation3], 1
    %8 = vsyncpa %s7, 0
    loop: start=0, step=1, limit=4
    $region2: #{tpu_custom_call.1} parent=1 // loop_pre_header
      _
    $region3: #{tpu_custom_call.1} parent=1 // loop_header
      %s10 = sphi 0, %s14
      %p11 = scmp.ge.s32.totalorder %s10, 4
      %s20 = sphi 0, %s22
      %s23 = sphi 0, %s20
      %s24 = sphi 0, %s23
      %s40 = sphi 0, %s24
      %s46 = sphi 0, %s48
      %s49 = sphi 0, %s46
      %s50 = sphi 0, %s49
      %s66 = sphi 0, %s50
    $region4: #{tpu_custom_call.1} parent=1 // loop_header_branch
      %13 = sbr.rel (%p11) target = $region8
    $region5: #{tpu_custom_call.1} parent=1 // loop_body
      %s15 = ssub.s32 %s10, 1
      %s16 = ssub.s32 %s10, 2
      %s17 = sadd.s32 %s10, 1
      %s18 = ssub.s32 %s10, %s17
      %p19 = scmp.eq.s32.totalorder %s18, 0
      %s21 = sadd.s32 %s20, 1
      %s22 = scalar_select %p19, %s20, %s21
      %p25 = pneg %p19
      %p26 = scmp.eq.s32.totalorder %s10, 1
      %p27 = por %p25, %p26
      %p28 = scmp.ne.s32.totalorder %s20, %s23
      %p29 = scmp.eq.s32.totalorder %s10, 0
      %p30 = por %p28, %p29
      %p31 = scmp.ne.s32.totalorder %s20, %s23
      %p32 = scmp.eq.s32.totalorder %s15, 1
      %p33 = por %p31, %p32
      %p34 = scmp.ne.s32.totalorder %s23, %s24
      %p35 = scmp.eq.s32.totalorder %s15, 0
      %p36 = por %p34, %p35
      %p37 = scmp.ne.s32.totalorder %s23, %s24
      %p38 = scmp.eq.s32.totalorder %s16, 1
      %p39 = por %p37, %p38
      %p41 = scmp.ne.s32.totalorder %s24, %s40
      %p42 = scmp.eq.s32.totalorder %s16, 0
      %p43 = por %p41, %p42
      %s44 = ssub.s32 %s10, %s17
      %p45 = scmp.eq.s32.totalorder %s44, 0
      %s47 = sadd.s32 %s46, 1
      %s48 = scalar_select %p45, %s46, %s47
      %p51 = pneg %p45
      %p52 = scmp.eq.s32.totalorder %s10, 1
      %p53 = por %p51, %p52
      %p54 = scmp.ne.s32.totalorder %s46, %s49
      %p55 = scmp.eq.s32.totalorder %s10, 0
      %p56 = por %p54, %p55
      %p57 = scmp.ne.s32.totalorder %s46, %s49
      %p58 = scmp.eq.s32.totalorder %s15, 1
      %p59 = por %p57, %p58
      %p60 = scmp.ne.s32.totalorder %s49, %s50
      %p61 = scmp.eq.s32.totalorder %s15, 0
      %p62 = por %p60, %p61
      %p63 = scmp.ne.s32.totalorder %s49, %s50
      %p64 = scmp.eq.s32.totalorder %s16, 1
      %p65 = por %p63, %p64
      %p67 = scmp.ne.s32.totalorder %s50, %s66
      %p68 = scmp.eq.s32.totalorder %s16, 0
      %p69 = por %p67, %p68
      %p70 = scmp.le.s32.totalorder 1, %s10
      %p71 = scmp.lt.s32.totalorder %s10, 3
      %p72 = pnand %p70, %p71
      %p73 = pneg %p72
      // Predicated region
      $region9: #{tpu_custom_call.1} parent=5 // pred_check
        _
      $region10: #{tpu_custom_call.1} parent=5 // pred_check_branch
        %75 = sbr.rel (%p72) target = $region12
      $region11: #{tpu_custom_call.1} parent=5 // pred_region
        %s76 = ssub.s32 %s10, 1
      $region12: #{tpu_custom_call.1} parent=5 // pred_fallthru
        _
      %p77 = scmp.lt.s32.totalorder %s10, 2
      // Predicated region
      $region13: #{tpu_custom_call.1} parent=5 // pred_check
        %p78 = pneg %p77
      $region14: #{tpu_custom_call.1} parent=5 // pred_check_branch
        %80 = sbr.rel (%p78) target = $region16
      $region15: #{tpu_custom_call.1} parent=5 // pred_region
        // Predicated region
        $region17: #{tpu_custom_call.1} parent=15 // pred_check
          %p81 = pneg %p30
        $region18: #{tpu_custom_call.1} parent=15 // pred_check_branch
          %83 = sbr.rel (%p81) target = $region20
        $region19: #{tpu_custom_call.1} parent=15 // pred_region
          %s84 = smul.u32 8, %s10
          %p85 = scmp.lt.s32.totalorder %s84, 15
          %s86 = scalar_select %p85, %s84, 15
          %s87 = smul.addr %s86, 8
          %s88 = scalar_lea.vmem %s0, %s87
          %s89 = smul.u32 8, %s10
        $region20: #{tpu_custom_call.1} parent=15 // pred_fallthru
          _
      $region16: #{tpu_custom_call.1} parent=5 // pred_fallthru
        _
      %p90 = scmp.le.s32.totalorder 1, %s10
      %p91 = scmp.lt.s32.totalorder %s10, 3
      %p92 = pnand %p90, %p91
      %p93 = pneg %p92
      // Predicated region
      $region21: #{tpu_custom_call.1} parent=5 // pred_check
        _
      $region22: #{tpu_custom_call.1} parent=5 // pred_check_branch
        %95 = sbr.rel (%p92) target = $region24
      $region23: #{tpu_custom_call.1} parent=5 // pred_region
        %s96 = ssub.s32 %s10, 1
        %s97 = smul.u32 8, %s15
        %p98 = scmp.lt.s32.totalorder %s97, 15
        %s99 = scalar_select %p98, %s97, 15
        %s100 = smul.addr %s99, 8
        %s101 = scalar_lea.vmem %s0, %s100
        %p102 = pneg %p36
        %p103 = pneg %p33
        %p104 = pneg %p62
        %p105 = pneg %p59
        %s106 = sand.u32 %s49, 1
        %s107 = scalar_lea.sflag [#allocation3], %s106
        %s108 = sand.u32 %s49, 1
        %s109 = smul.addr %s108, 64
        %s110 = scalar_lea.vmem [#allocation2], %s109
        %s111 = smul.u32 8, %s15
        %p112 = scmp.lt.s32.totalorder %s111, 15
        %s113 = scalar_select %p112, %s111, 15
        %s114 = smul.addr %s113, 8
        %s115 = scalar_lea.vmem %s0, %s114
        %s116 = smul.u32 8, %s15
        %s117 = smul.u32 8, %s15
        %v118 = vld [vmem:[%s115] sm:$0xff]
        %v119 = vld [vmem:[%s115 + $0x8] sm:$0xff]
        %v120 = vld [vmem:[%s115 + $0x10] sm:$0xff]
        %v121 = vld [vmem:[%s115 + $0x18] sm:$0xff]
        %v122 = vld [vmem:[%s115 + $0x20] sm:$0xff]
        %v123 = vld [vmem:[%s115 + $0x28] sm:$0xff]
        %v124 = vld [vmem:[%s115 + $0x30] sm:$0xff]
        %v125 = vld [vmem:[%s115 + $0x38] sm:$0xff]
        %v126 = vmul.f32 %v118, %v118
        %v127 = vmul.f32 %v119, %v119
        %v128 = vmul.f32 %v120, %v120
        %v129 = vmul.f32 %v121, %v121
        %v130 = vmul.f32 %v122, %v122
        %v131 = vmul.f32 %v123, %v123
        %v132 = vmul.f32 %v124, %v124
        %v133 = vmul.f32 %v125, %v125
        %v134 = vmul.f32 %v126, %v118
        %v135 = vmul.f32 %v127, %v119
        %v136 = vmul.f32 %v128, %v120
        %v137 = vmul.f32 %v129, %v121
        %v138 = vmul.f32 %v130, %v122
        %v139 = vmul.f32 %v131, %v123
        %v140 = vmul.f32 %v132, %v124
        %v141 = vmul.f32 %v133, %v125
        %v142 = vmul.f32 %v126, %v126
        %v143 = vmul.f32 %v127, %v127
        %v144 = vmul.f32 %v128, %v128
        %v145 = vmul.f32 %v129, %v129
        %v146 = vmul.f32 %v130, %v130
        %v147 = vmul.f32 %v131, %v131
        %v148 = vmul.f32 %v132, %v132
        %v149 = vmul.f32 %v133, %v133
        %vm150 = vcmask 261120
        %151 = vst.msk [vmem:[%s110] sm:$0xff] %vm150, %v118
        %152 = vst.msk [vmem:[%s110 + $0x8] sm:$0xff] %vm150, %v119
        %153 = vst.msk [vmem:[%s110 + $0x10] sm:$0xff] %vm150, %v120
        %154 = vst.msk [vmem:[%s110 + $0x18] sm:$0xff] %vm150, %v121
        %155 = vst.msk [vmem:[%s110 + $0x20] sm:$0xff] %vm150, %v122
        %156 = vst.msk [vmem:[%s110 + $0x28] sm:$0xff] %vm150, %v123
        %157 = vst.msk [vmem:[%s110 + $0x30] sm:$0xff] %vm150, %v124
        %158 = vst.msk [vmem:[%s110 + $0x38] sm:$0xff] %vm150, %v125
        %167 = vrot.lane.b32.xlu0 %v126, 32
        %v168 = vpop.permute.xlu0 %167
        %169 = vrot.lane.b32.xlu0 %v127, 32
        %v170 = vpop.permute.xlu0 %169
        %171 = vrot.lane.b32.xlu0 %v128, 32
        %v172 = vpop.permute.xlu0 %171
        %173 = vrot.lane.b32.xlu0 %v129, 32
        %v174 = vpop.permute.xlu0 %173
        %175 = vrot.lane.b32.xlu0 %v130, 32
        %v176 = vpop.permute.xlu0 %175
        %177 = vrot.lane.b32.xlu0 %v131, 32
        %v178 = vpop.permute.xlu0 %177
        %179 = vrot.lane.b32.xlu0 %v132, 32
        %v180 = vpop.permute.xlu0 %179
        %181 = vrot.lane.b32.xlu0 %v133, 32
        %v182 = vpop.permute.xlu0 %181
        %vm191 = vcmask 523520
        %192 = vst.msk [vmem:[%s110] sm:$0xff] %vm191, %v168
        %193 = vst.msk [vmem:[%s110 + $0x8] sm:$0xff] %vm191, %v170
        %194 = vst.msk [vmem:[%s110 + $0x10] sm:$0xff] %vm191, %v172
        %195 = vst.msk [vmem:[%s110 + $0x18] sm:$0xff] %vm191, %v174
        %196 = vst.msk [vmem:[%s110 + $0x20] sm:$0xff] %vm191, %v176
        %197 = vst.msk [vmem:[%s110 + $0x28] sm:$0xff] %vm191, %v178
        %198 = vst.msk [vmem:[%s110 + $0x30] sm:$0xff] %vm191, %v180
        %199 = vst.msk [vmem:[%s110 + $0x38] sm:$0xff] %vm191, %v182
        %208 = vrot.lane.b32.xlu0 %v134, 64
        %v209 = vpop.permute.xlu0 %208
        %210 = vrot.lane.b32.xlu0 %v135, 64
        %v211 = vpop.permute.xlu0 %210
        %212 = vrot.lane.b32.xlu0 %v136, 64
        %v213 = vpop.permute.xlu0 %212
        %214 = vrot.lane.b32.xlu0 %v137, 64
        %v215 = vpop.permute.xlu0 %214
        %216 = vrot.lane.b32.xlu0 %v138, 64
        %v217 = vpop.permute.xlu0 %216
        %218 = vrot.lane.b32.xlu0 %v139, 64
        %v219 = vpop.permute.xlu0 %218
        %220 = vrot.lane.b32.xlu0 %v140, 64
        %v221 = vpop.permute.xlu0 %220
        %222 = vrot.lane.b32.xlu0 %v141, 64
        %v223 = vpop.permute.xlu0 %222
        %vm232 = vcmask 785920
        %233 = vst.msk [vmem:[%s110] sm:$0xff] %vm232, %v209
        %234 = vst.msk [vmem:[%s110 + $0x8] sm:$0xff] %vm232, %v211
        %235 = vst.msk [vmem:[%s110 + $0x10] sm:$0xff] %vm232, %v213
        %236 = vst.msk [vmem:[%s110 + $0x18] sm:$0xff] %vm232, %v215
        %237 = vst.msk [vmem:[%s110 + $0x20] sm:$0xff] %vm232, %v217
        %238 = vst.msk [vmem:[%s110 + $0x28] sm:$0xff] %vm232, %v219
        %239 = vst.msk [vmem:[%s110 + $0x30] sm:$0xff] %vm232, %v221
        %240 = vst.msk [vmem:[%s110 + $0x38] sm:$0xff] %vm232, %v223
        %249 = vrot.lane.b32.xlu0 %v142, 96
        %v250 = vpop.permute.xlu0 %249
        %251 = vrot.lane.b32.xlu0 %v143, 96
        %v252 = vpop.permute.xlu0 %251
        %253 = vrot.lane.b32.xlu0 %v144, 96
        %v254 = vpop.permute.xlu0 %253
        %255 = vrot.lane.b32.xlu0 %v145, 96
        %v256 = vpop.permute.xlu0 %255
        %257 = vrot.lane.b32.xlu0 %v146, 96
        %v258 = vpop.permute.xlu0 %257
        %259 = vrot.lane.b32.xlu0 %v147, 96
        %v260 = vpop.permute.xlu0 %259
        %261 = vrot.lane.b32.xlu0 %v148, 96
        %v262 = vpop.permute.xlu0 %261
        %263 = vrot.lane.b32.xlu0 %v149, 96
        %v264 = vpop.permute.xlu0 %263
        %vm273 = vcmask 1048320
        %274 = vst.msk [vmem:[%s110] sm:$0xff] %vm273, %v250
        %275 = vst.msk [vmem:[%s110 + $0x8] sm:$0xff] %vm273, %v252
        %276 = vst.msk [vmem:[%s110 + $0x10] sm:$0xff] %vm273, %v254
        %277 = vst.msk [vmem:[%s110 + $0x18] sm:$0xff] %vm273, %v256
        %278 = vst.msk [vmem:[%s110 + $0x20] sm:$0xff] %vm273, %v258
        %279 = vst.msk [vmem:[%s110 + $0x28] sm:$0xff] %vm273, %v260
        %280 = vst.msk [vmem:[%s110 + $0x30] sm:$0xff] %vm273, %v262
        %281 = vst.msk [vmem:[%s110 + $0x38] sm:$0xff] %vm273, %v264
        %s282 = sand.u32 %s49, 1
        %s283 = scalar_lea.sflag [#allocation3], %s282
        %s284 = sand.u32 %s49, 1
        %s285 = smul.addr %s284, 64
        %s286 = scalar_lea.vmem [#allocation2], %s285
        // Predicated region
        $region25: #{tpu_custom_call.1} parent=23 // pred_check
          %p287 = pneg %p59
        $region26: #{tpu_custom_call.1} parent=23 // pred_check_branch
          %289 = sbr.rel (%p287) target = $region28
        $region27: #{tpu_custom_call.1} parent=23 // pred_region
          %s290 = smul.u32 8, %s15
          %292 = vsyncadd %s283, 0
          %s293 = smul.addr %s290, 8
          %s294 = scalar_lea.hbm %s1, %s293
          %s295 = sshll.u32 %s286, 4
          %s296 = int_to_ptr.vmem [resolvable:$true] %s295
          %s297 = sshll.u32 %s294, 4
          %s298 = int_to_ptr.hbm [resolvable:$true] %s297
          %303 = dma.vmem_to_hbm [thread:$0]  %s296, 1024, %s298, %s283, 128, 128, 8
        $region28: #{tpu_custom_call.1} parent=23 // pred_fallthru
          _
      $region24: #{tpu_custom_call.1} parent=5 // pred_fallthru
        _
      %p304 = scmp.le.s32.totalorder 2, %s10
      // Predicated region
      $region29: #{tpu_custom_call.1} parent=5 // pred_check
        %p305 = pneg %p304
      $region30: #{tpu_custom_call.1} parent=5 // pred_check_branch
        %307 = sbr.rel (%p305) target = $region32
      $region31: #{tpu_custom_call.1} parent=5 // pred_region
        %s308 = ssub.s32 %s10, 2
        // Predicated region
        $region33: #{tpu_custom_call.1} parent=31 // pred_check
          %p309 = pneg %p65
        $region34: #{tpu_custom_call.1} parent=31 // pred_check_branch
          %311 = sbr.rel (%p309) target = $region36
        $region35: #{tpu_custom_call.1} parent=31 // pred_region
          %s312 = sand.u32 %s50, 1
          %s313 = scalar_lea.sflag [#allocation3], %s312
          %s314 = sand.u32 %s50, 1
          %s315 = smul.addr %s314, 64
          %s316 = scalar_lea.vmem [#allocation2], %s315
          %318 = dma.done %s313, 1024
        $region36: #{tpu_custom_call.1} parent=31 // pred_fallthru
          _
      $region32: #{tpu_custom_call.1} parent=5 // pred_fallthru
        _
    $region6: #{tpu_custom_call.1} parent=1 // loop_footer
      %s14 = sadd.s32 1, %s10
    $region7: #{tpu_custom_call.1} parent=1 // loop_footer_branch
      %9 = sbr.rel target = $region3
    $region8: #{tpu_custom_call.1} parent=1 // loop_exit
      _
    %319 = vsyncpa [#allocation3], 1
    %s320 = scalar_lea.sflag [#allocation3], 1
    %321 = vsyncpa %s320, 1

</llo_original>
